<compile_context>
chip_gen: v5e
topology: v5e:2x2
jax: 0.10.0
libtpu: 0.0.40
codegen_flags: <defaults>
</compile_context>

<pallas_src>
import math
import functools

import jax
import jax.numpy as jnp
from jax import lax
from jax.experimental import pallas as pl
from jax.experimental.pallas import tpu as pltpu


def build_pe_table(d_model: int, max_len: int = 5000) -> jnp.ndarray:
    """Deterministic positional-encoding buffer, identical to the torch __init__."""
    position = jnp.arange(max_len, dtype=jnp.float32)[:, None]                 # (max_len, 1)
    div_term = jnp.exp(
        jnp.arange(0, d_model, 2, dtype=jnp.float32) * (-math.log(10000.0) / d_model)
    )                                                                          # (d_model/2,)
    args = position * div_term                                                 # (max_len, d_model/2)
    pe = jnp.stack([jnp.sin(args), jnp.cos(args)], axis=-1).reshape(max_len, d_model)
    return pe[:, None, :]                                                      # (max_len, 1, d_model)


def _mix32(x):
    """splitmix32-style 32-bit finalizer ('lowbias32'); plenty for dropout masks."""
    x = x ^ (x >> 16)
    x = x * jnp.uint32(0x7FEB352D)
    x = x ^ (x >> 15)
    x = x * jnp.uint32(0x846CA68B)
    x = x ^ (x >> 16)
    return x


def _pe_dropout_kernel(seed_ref, x_ref, pe_ref, o_ref, *,
                       p: float, apply_dropout: bool, block_s: int):
    x = x_ref[...]                                # (TS, B, D)
    pe = pe_ref[...].astype(x.dtype)              # (TS, 1, D) -> broadcasts over batch
    y = x + pe

    if apply_dropout:
        _, b, d = y.shape
        tile = pl.program_id(0)
        # Unique global element index (same randoms regardless of tiling).
        s_iota = lax.broadcasted_iota(jnp.int32, y.shape, 0) + tile * block_s
        b_iota = lax.broadcasted_iota(jnp.int32, y.shape, 1)
        d_iota = lax.broadcasted_iota(jnp.int32, y.shape, 2)
        flat = (s_iota * (b * d) + b_iota * d + d_iota).astype(jnp.uint32)
        seed = (seed_ref[0].astype(jnp.uint32) + jnp.uint32(1)) * jnp.uint32(0x9E3779B9)
        bits = _mix32(flat + seed)
        # Integer threshold compare: drop w.p. p, no float conversion of the bits.
        threshold = jnp.uint32(min(int(round(p * 2.0 ** 32)), 2 ** 32 - 1))
        keep = bits >= threshold
        scale = jnp.asarray(1.0 / (1.0 - p), dtype=y.dtype)
        y = jnp.where(keep, y * scale, jnp.zeros_like(y))

    o_ref[...] = y.astype(o_ref.dtype)


def positional_encoding_forward(x, pe_table, *, p=0.1, training=True, seed=0,
                                force_kernel=False):
    """x: (S, B, D).  Returns dropout(x + pe[:S]) with nn.Dropout semantics."""
    S, B, D = x.shape
    pe_slice = pe_table[:S]                       # (S, 1, D) float32

    apply_dropout = bool(training) and (p > 0.0)
    if apply_dropout and p >= 1.0:
        return jnp.zeros_like(x)
    if (not apply_dropout) and (not force_kernel):
        # Pure eval path: let XLA fuse the elementwise add with adjacent ops.
        return x + pe_slice.astype(x.dtype)

    itemsize = jnp.dtype(x.dtype).itemsize
    # Sequence-tile so one x block is ~2 MiB: double-buffered in + out + pe stays
    # well inside even v5e's 16 MiB scoped-VMEM default (and v7x's 64 MiB VMEM).
    target_block_bytes = 2 * 1024 * 1024
    rows = max(1, target_block_bytes // max(1, B * D * itemsize))
    ts = min(S, rows)
    if ts >= 8:
        ts = (ts // 8) * 8
    grid = (pl.cdiv(S, ts),)

    seed_arr = jnp.array([seed], dtype=jnp.int32)
    kernel = functools.partial(
        _pe_dropout_kernel, p=float(p), apply_dropout=apply_dropout, block_s=ts)

    cost = pl.CostEstimate(
        flops=S * B * D,
        transcendentals=0,
        bytes_accessed=2 * S * B * D * itemsize + S * D * 4,
    )

    return pl.pallas_call(
        kernel,
        out_shape=jax.ShapeDtypeStruct((S, B, D), x.dtype),
        grid_spec=pltpu.PrefetchScalarGridSpec(
            num_scalar_prefetch=1,
            grid=grid,
            in_specs=[
                pl.BlockSpec((ts, B, D), lambda i, seed: (i, 0, 0)),
                pl.BlockSpec((ts, 1, D), lambda i, seed: (i, 0, 0)),
            ],
            out_specs=pl.BlockSpec((ts, B, D), lambda i, seed: (i, 0, 0)),
        ),
        compiler_params=pltpu.CompilerParams(
            # S-tiles are independent -> shards across v7x's two TensorCores.
            dimension_semantics=("parallel",),
        ),
        cost_estimate=cost,
    )(seed_arr, x, pe_slice)


if __name__ == "__main__":
    d_model = 32
    seq_len = 8
    batch = 2

    key = jax.random.PRNGKey(0)
    x = jax.random.normal(key, (seq_len, batch, d_model), dtype=jnp.float32)
    pe_table = build_pe_table(d_model, max_len=5000)
    ref = x + pe_table[:seq_len]

    # 1) Kernel path with dropout disabled: exact check against plain-JAX reference.
    out_eval = positional_encoding_forward(x, pe_table, p=0.1, training=False,
                                           force_kernel=True)
    out_eval = jax.block_until_ready(out_eval)
    assert out_eval.shape == (seq_len, batch, d_model)
    assert jnp.allclose(out_eval, ref, atol=1e-5, rtol=1e-5), "eval-mode mismatch"

    # 2) Training path: every element must be 0 (dropped) or (x+pe)/(1-p) (kept).
    p = 0.25
    out_train = positional_encoding_forward(x, pe_table, p=p, training=True, seed=123)
    out_train = jax.block_until_ready(out_train)
    assert out_train.shape == (seq_len, batch, d_model)
    scaled = ref * jnp.float32(1.0 / (1.0 - p))
    is_zero = jnp.isclose(out_train, 0.0, atol=1e-6)
    is_scaled = jnp.isclose(out_train, scaled, atol=1e-6, rtol=1e-5)
    assert bool(jnp.all(is_zero | is_scaled)), "training-mode values malformed"
    frac_dropped = float(jnp.mean(is_zero.astype(jnp.float32)))
    assert 0.05 < frac_dropped < 0.55, f"dropout fraction looks wrong: {frac_dropped}"

    # 3) Eval fast path (plain JAX) still matches.
    out_fast = jax.block_until_ready(
        positional_encoding_forward(x, pe_table, p=0.1, training=False))
    assert jnp.allclose(out_fast, ref, atol=1e-6)

    print("KERNEL_OK")
</pallas_src>

<mosaic_0001>
module attributes {stable_mosaic.version = 11 : i64} {
  func.func @_pe_dropout_kernel(%arg0: i32, %arg1: memref<1xi32, #tpu.memory_space<smem>>, %arg2: memref<8x2x32xf32, #tpu.memory_space<vmem>>, %arg3: memref<8x1x32xf32, #tpu.memory_space<vmem>>, %arg4: memref<8x2x32xf32, #tpu.memory_space<vmem>>) attributes {dimension_semantics = [#tpu.dimension_semantics<parallel>], iteration_bounds = array<i64: 1>, scalar_prefetch = 1 : i64, scratch_operands = 0 : i64, tpu.core_type = #tpu.core_type<tc>, window_params = [{transform_indices = @transform_0, window_bounds = array<i64: 8, 2, 32>}, {transform_indices = @transform_1, window_bounds = array<i64: 8, 1, 32>}, {transform_indices = @transform_2, window_bounds = array<i64: 8, 2, 32>}]} {
    %c0 = arith.constant 0 : index
    %c0_0 = arith.constant 0 : index
    %c0_1 = arith.constant 0 : index
    %0 = vector.load %arg2[%c0, %c0_0, %c0_1] : memref<8x2x32xf32, #tpu.memory_space<vmem>>, vector<8x2x32xf32>
    %c0_2 = arith.constant 0 : index
    %c0_3 = arith.constant 0 : index
    %c0_4 = arith.constant 0 : index
    %1 = vector.load %arg3[%c0_2, %c0_3, %c0_4] : memref<8x1x32xf32, #tpu.memory_space<vmem>>, vector<8x1x32xf32>
    %2 = vector.broadcast %1 : vector<8x1x32xf32> to vector<8x2x32xf32>
    %3 = arith.addf %0, %2 : vector<8x2x32xf32>
    %c0_5 = arith.constant 0 : index
    %c0_6 = arith.constant 0 : index
    %c0_7 = arith.constant 0 : index
    %4 = vector.load %arg4[%c0_5, %c0_6, %c0_7] : memref<8x2x32xf32, #tpu.memory_space<vmem>>, vector<8x2x32xf32>
    tpu.vector_store %arg4[%c0_5, %c0_6, %c0_7], %3 {strides = array<i32>} : memref<8x2x32xf32, #tpu.memory_space<vmem>>, vector<8x2x32xf32>,
    return
  }
  func.func @transform_0(%arg0: i32, %arg1: memref<1xi32, #tpu.memory_space<smem>>) -> (i32, i32, i32) {
    %c0_i32 = arith.constant 0 : i32
    %c0_i32_0 = arith.constant 0 : i32
    %c0_i32_1 = arith.constant 0 : i32
    return %arg0, %c0_i32, %c0_i32_0 : i32, i32, i32
  }
  func.func @transform_1(%arg0: i32, %arg1: memref<1xi32, #tpu.memory_space<smem>>) -> (i32, i32, i32) {
    %c0_i32 = arith.constant 0 : i32
    %c0_i32_0 = arith.constant 0 : i32
    %c0_i32_1 = arith.constant 0 : i32
    return %arg0, %c0_i32, %c0_i32_0 : i32, i32, i32
  }
  func.func @transform_2(%arg0: i32, %arg1: memref<1xi32, #tpu.memory_space<smem>>) -> (i32, i32, i32) {
    %c0_i32 = arith.constant 0 : i32
    %c0_i32_0 = arith.constant 0 : i32
    %c0_i32_1 = arith.constant 0 : i32
    return %arg0, %c0_i32, %c0_i32_0 : i32, i32, i32
  }
}

</mosaic_0001>

<llo_original>
// kernel: tpu_custom_call.1
$region0: #{tpu_custom_call.1}
  #allocation0 [shape = 'u32[]', space=smem, size = 0x4, offset = 0x4, fixed_abs, tag = 'smem constant byte address 0x4 - core index']
  #allocation1 [shape = 'u32[72,128]{1,0:T(1,128)}', space=vmem, size = 0x9000, scoped, tag = 'internal scratch']
  #allocation2 [shape = 's32[1]{0}', space=sflag, size = 0x4, scoped, tag = 'scoped memory for tpu_custom_call.1']
  #allocation3 [shape = 's32[1]{0:T(128)S(6)}', space=smem, size = 0x200, scoped, tag = 'prefetched SMEM operand 0']
  %s0 = inlined_call_operand.<no memory space> [shape: s32[1], index: 0, kind: input, shape index: {}]
  %s1 = inlined_call_operand.hbm [shape: f32[8,2,32], index: 1, kind: input, shape index: {}]
  %s2 = inlined_call_operand.hbm [shape: f32[8,1,32], index: 2, kind: input, shape index: {}]
  %s3 = inlined_call_operand.hbm [shape: f32[8,2,32], index: 3, kind: output, shape index: {}]
  %s4 = sld [smem:[#allocation0]]
  $region26: #{tpu_custom_call.1} parent=0
    _
  %s6 = ssub.s32 1, %s4
  %s7 = scalar_select 0, %s6, %s4
  %8 = sst [smem:[#allocation3]] %s0
  $region1: #{tpu_custom_call.1} parent=0
    #allocation4 [shape = 'u8[8192]{0}', space=vmem, size = 0x2000, scoped, tag = 'input window, operand 1, single buffered']
    #allocation5 [shape = 's32[1]{0}', space=sflag, size = 0x4, scoped, tag = 'scoped memory for tpu_custom_call.1']
    #allocation6 [shape = 's32[1]{0}', space=sflag, size = 0x4, scoped, tag = 'scoped memory for tpu_custom_call.1']
    #allocation7 [shape = 'u8[4096]{0}', space=vmem, size = 0x1000, scoped, tag = 'input window, operand 2, single buffered']
    #allocation8 [shape = 's32[1]{0}', space=sflag, size = 0x4, scoped, tag = 'scoped memory for tpu_custom_call.1']
    #allocation9 [shape = 'u8[8192]{0}', space=vmem, size = 0x2000, scoped, tag = 'output window, operand 0, single buffered']
    %9 = vsyncpa [#allocation5], 0
    %10 = vsyncpa [#allocation8], 0
    %11 = vsyncpa [#allocation6], 0
    // Predicated region
    $region2: #{tpu_custom_call.1} parent=1 // pred_check
      _
    $region3: #{tpu_custom_call.1} parent=1 // pred_check_branch
      %13 = sbr.rel (0) target = $region5
    $region4: #{tpu_custom_call.1} parent=1 // pred_region
      %15 = vsyncadd [#allocation5], 0
      %s16 = sshll.u32 %s1, 4
      %s17 = int_to_ptr.hbm [resolvable:$true] %s16
      %s18 = sshll.u32 [#allocation4], 4
      %s19 = int_to_ptr.vmem [resolvable:$true] %s18
      %24 = dma.hbm_to_vmem [thread:$0]  %s17, 256, %s19, [#allocation5], 32, 32, 2
    $region5: #{tpu_custom_call.1} parent=1 // pred_fallthru
      _
    // Predicated region
    $region6: #{tpu_custom_call.1} parent=1 // pred_check
      _
    $region7: #{tpu_custom_call.1} parent=1 // pred_check_branch
      %26 = sbr.rel (0) target = $region9
    $region8: #{tpu_custom_call.1} parent=1 // pred_region
      %28 = vsyncadd [#allocation8], 0
      %s29 = sshll.u32 %s2, 4
      %s30 = int_to_ptr.hbm [resolvable:$true] %s29
      %s31 = sshll.u32 [#allocation7], 4
      %s32 = int_to_ptr.vmem [resolvable:$true] %s31
      %37 = dma.hbm_to_vmem [thread:$0]  %s30, 128, %s32, [#allocation8], 16, 16, 1
    $region9: #{tpu_custom_call.1} parent=1 // pred_fallthru
      _
    // Predicated region
    $region10: #{tpu_custom_call.1} parent=1 // pred_check
      _
    $region11: #{tpu_custom_call.1} parent=1 // pred_check_branch
      %39 = sbr.rel (0) target = $region13
    $region12: #{tpu_custom_call.1} parent=1 // pred_region
      %41 = dma.done [#allocation5], 256
    $region13: #{tpu_custom_call.1} parent=1 // pred_fallthru
      _
    // Predicated region
    $region14: #{tpu_custom_call.1} parent=1 // pred_check
      _
    $region15: #{tpu_custom_call.1} parent=1 // pred_check_branch
      %43 = sbr.rel (0) target = $region17
    $region16: #{tpu_custom_call.1} parent=1 // pred_region
      %45 = dma.done [#allocation8], 128
    $region17: #{tpu_custom_call.1} parent=1 // pred_fallthru
      _
    %v46 = vld [vmem:[#allocation4] sm:$0x3]
    %v47 = vld [vmem:[#allocation4 + $0x2] sm:$0x3]
    %v48 = vld [vmem:[#allocation4 + $0x4] sm:$0x3]
    %v49 = vld [vmem:[#allocation4 + $0x6] sm:$0x3]
    %v50 = vld [vmem:[#allocation4 + $0x8] sm:$0x3]
    %v51 = vld [vmem:[#allocation4 + $0xa] sm:$0x3]
    %v52 = vld [vmem:[#allocation4 + $0xc] sm:$0x3]
    %v53 = vld [vmem:[#allocation4 + $0xe] sm:$0x3]
    %v54 = vld [vmem:[#allocation7] sm:$0x1]
    %v55 = vld [vmem:[#allocation7 + $0x1] sm:$0x1]
    %v56 = vld [vmem:[#allocation7 + $0x2] sm:$0x1]
    %v57 = vld [vmem:[#allocation7 + $0x3] sm:$0x1]
    %v58 = vld [vmem:[#allocation7 + $0x4] sm:$0x1]
    %v59 = vld [vmem:[#allocation7 + $0x5] sm:$0x1]
    %v60 = vld [vmem:[#allocation7 + $0x6] sm:$0x1]
    %v61 = vld [vmem:[#allocation7 + $0x7] sm:$0x1]
    %v70 = vperm.slane %v54, 0
    %v71 = vperm.slane %v55, 0
    %v72 = vperm.slane %v56, 0
    %v73 = vperm.slane %v57, 0
    %v74 = vperm.slane %v58, 0
    %v75 = vperm.slane %v59, 0
    %v76 = vperm.slane %v60, 0
    %v77 = vperm.slane %v61, 0
    %v86 = vadd.f32 %v46, %v70
    %v87 = vadd.f32 %v47, %v71
    %v88 = vadd.f32 %v48, %v72
    %v89 = vadd.f32 %v49, %v73
    %v90 = vadd.f32 %v50, %v74
    %v91 = vadd.f32 %v51, %v75
    %v92 = vadd.f32 %v52, %v76
    %v93 = vadd.f32 %v53, %v77
    %vm94 = vcmask 254976
    %95 = vst.msk [vmem:[#allocation9] sm:$0x3] %vm94, %v86
    %96 = vst.msk [vmem:[#allocation9 + $0x2] sm:$0x3] %vm94, %v87
    %97 = vst.msk [vmem:[#allocation9 + $0x4] sm:$0x3] %vm94, %v88
    %98 = vst.msk [vmem:[#allocation9 + $0x6] sm:$0x3] %vm94, %v89
    %99 = vst.msk [vmem:[#allocation9 + $0x8] sm:$0x3] %vm94, %v90
    %100 = vst.msk [vmem:[#allocation9 + $0xa] sm:$0x3] %vm94, %v91
    %101 = vst.msk [vmem:[#allocation9 + $0xc] sm:$0x3] %vm94, %v92
    %102 = vst.msk [vmem:[#allocation9 + $0xe] sm:$0x3] %vm94, %v93
    // Predicated region
    $region18: #{tpu_custom_call.1} parent=1 // pred_check
      _
    $region19: #{tpu_custom_call.1} parent=1 // pred_check_branch
      %104 = sbr.rel (0) target = $region21
    $region20: #{tpu_custom_call.1} parent=1 // pred_region
      %106 = vsyncadd [#allocation6], 0
      %s107 = sshll.u32 [#allocation9], 4
      %s108 = int_to_ptr.vmem [resolvable:$true] %s107
      %s109 = sshll.u32 %s3, 4
      %s110 = int_to_ptr.hbm [resolvable:$true] %s109
      %115 = dma.vmem_to_hbm [thread:$0]  %s108, 256, %s110, [#allocation6], 32, 32, 2
    $region21: #{tpu_custom_call.1} parent=1 // pred_fallthru
      _
    // Predicated region
    $region22: #{tpu_custom_call.1} parent=1 // pred_check
      _
    $region23: #{tpu_custom_call.1} parent=1 // pred_check_branch
      %117 = sbr.rel (0) target = $region25
    $region24: #{tpu_custom_call.1} parent=1 // pred_region
      %119 = dma.done [#allocation6], 256
    $region25: #{tpu_custom_call.1} parent=1 // pred_fallthru
      _
    %120 = vsyncpa [#allocation5], 1
    %121 = vsyncpa [#allocation8], 1
    %122 = vsyncpa [#allocation6], 1

</llo_original>
